<compile_context>
chip_gen: v7x
topology: tpu7x:2x2x1
jax: 0.10.0
libtpu: 0.0.40
codegen_flags: <defaults>
</compile_context>

<pallas_src>
import jax
import jax.numpy as jnp
from jax.experimental import pallas as pl
from jax.experimental.pallas import tpu as pltpu


def pointer_kernel(ctx_ref, h_ref, emb_ref, wc_ref, wh_ref, we_ref, b_ref,
                   out_ref):
    """ctx/h: (tb, H), emb: (tb, E), wc/wh: (1, H), we: (1, E), b: SMEM (1,),
    out: (tb, 1)."""
    # Cast after the (possibly sub-32-bit) HBM->VMEM load; accumulate in f32.
    ctx = ctx_ref[...].astype(jnp.float32)
    hl = h_ref[...].astype(jnp.float32)
    emb = emb_ref[...].astype(jnp.float32)
    wc = wc_ref[...].astype(jnp.float32)
    wh = wh_ref[...].astype(jnp.float32)
    we = we_ref[...].astype(jnp.float32)

    # VPU elementwise multiply (weight row broadcast over sublanes) + XLU
    # lane reduce per feature group, then EUP sigmoid.
    logit = (jnp.sum(ctx * wc, axis=-1, keepdims=True)
             + jnp.sum(hl * wh, axis=-1, keepdims=True)
             + jnp.sum(emb * we, axis=-1, keepdims=True)
             + b_ref[0])
    out_ref[...] = jax.nn.sigmoid(logit).astype(out_ref.dtype)


def pointer_forward(context, h, x_ids, embed_table, w, b):
    """
    context     : (B, H) or (B, 1, H)   attention vector
    h           : (L, B, H)             decoder state
    x_ids       : (B,) int32            decoder input token ids
    embed_table : (V, E)                embedding weights
    w           : (1, E + 2H)           p_gen Linear weight (PyTorch layout)
    b           : (1,)                  p_gen Linear bias
    returns     : (B, 1)                generation probability
    """
    if context.ndim == 3:
        context = jnp.squeeze(context, axis=1)     # (B, 1, H) -> (B, H)
    h_last = h[-1]                                 # (B, H)
    B, H = context.shape
    E = embed_table.shape[1]

    # cat order in the reference is (context, h[-1], emb):
    w_ctx = w[:, :H]                               # (1, H)
    w_h = w[:, H:2 * H]                            # (1, H)
    w_emb = w[:, 2 * H:]                           # (1, E)

    # Per-call row gather only (B x E bytes); never streams the V x E table.
    emb = embed_table[x_ids.astype(jnp.int32)]     # (B, E)

    bias = b.astype(jnp.float32).reshape(1)        # scalar -> SMEM

    # ---- batch tile: biggest tile under a conservative VMEM budget ----
    # Budget ~8 MiB of streamed (double-buffered) bytes: safe under v5e's
    # 16 MiB default-scoped VMEM and v7x's 64 MiB physical VMEM, and large
    # enough (>=512 rows for H<=1024 f32) to sit near the HBM roofline.
    itemsize = max(jnp.dtype(context.dtype).itemsize,
                   jnp.dtype(h_last.dtype).itemsize,
                   jnp.dtype(emb.dtype).itemsize)
    row_bytes = (2 * H + E + 1) * itemsize
    budget = 8 * 1024 * 1024
    tb_cap = max(8, (budget // (2 * row_bytes)) // 8 * 8)
    tb_cap = min(tb_cap, 2048)
    tb = B if B <= tb_cap else tb_cap              # tb == B or tb % 8 == 0
    grid = (pl.cdiv(B, tb),)                       # ragged tail block is masked

    return pl.pallas_call(
        pointer_kernel,
        out_shape=jax.ShapeDtypeStruct((B, 1), jnp.float32),
        grid=grid,
        in_specs=[
            pl.BlockSpec((tb, H), lambda i: (i, 0)),    # context rows
            pl.BlockSpec((tb, H), lambda i: (i, 0)),    # h[-1] rows
            pl.BlockSpec((tb, E), lambda i: (i, 0)),    # embedding rows
            pl.BlockSpec((1, H), lambda i: (0, 0)),     # w_ctx row
            pl.BlockSpec((1, H), lambda i: (0, 0)),     # w_h row
            pl.BlockSpec((1, E), lambda i: (0, 0)),     # w_emb row
            pl.BlockSpec(memory_space=pltpu.MemorySpace.SMEM),   # bias scalar
        ],
        out_specs=pl.BlockSpec((tb, 1), lambda i: (i, 0)),
        compiler_params=pltpu.CompilerParams(
            dimension_semantics=("parallel",)),
    )(context, h_last, emb, w_ctx, w_h, w_emb, bias)


def pointer_reference(context, h, x_ids, embed_table, w, b):
    """Pure-JAX reference matching the PyTorch forward."""
    if context.ndim == 3:
        context = jnp.squeeze(context, axis=1)
    emb = embed_table[x_ids]                       # (B, E)
    cat = jnp.concatenate([context, h[-1], emb], axis=1)
    logit = cat @ w.T + b
    return jax.nn.sigmoid(logit)


if __name__ == "__main__":
    # small, deterministic example shapes
    B, H, E, V, L = 2, 32, 32, 16, 2

    key = jax.random.PRNGKey(0)
    k1, k2, k3, k4, k5, k6 = jax.random.split(key, 6)

    context = jax.random.normal(k1, (B, 1, H), dtype=jnp.float32)  # squeezed inside
    h = jax.random.normal(k2, (L, B, H), dtype=jnp.float32)
    x_ids = jax.random.randint(k3, (B,), 0, V, dtype=jnp.int32)

    embed_table = jax.random.normal(k4, (V, E), dtype=jnp.float32) * 0.1
    w = jax.random.normal(k5, (1, E + 2 * H), dtype=jnp.float32) * 0.1
    b = jax.random.normal(k6, (1,), dtype=jnp.float32) * 0.1

    out = pointer_forward(context, h, x_ids, embed_table, w, b)
    out = jax.block_until_ready(out)

    ref = pointer_reference(context, h, x_ids, embed_table, w, b)
    assert out.shape == (B, 1)
    assert jnp.allclose(out, ref, atol=1e-5, rtol=1e-5), (out, ref)

    print("KERNEL_OK")
</pallas_src>

<mosaic_0001>
module attributes {stable_mosaic.version = 11 : i64} {
  func.func @pointer_kernel(%arg0: i32, %arg1: memref<2x32xf32, #tpu.memory_space<vmem>>, %arg2: memref<2x32xf32, #tpu.memory_space<vmem>>, %arg3: memref<2x32xf32, #tpu.memory_space<vmem>>, %arg4: memref<1x32xf32, #tpu.memory_space<vmem>>, %arg5: memref<1x32xf32, #tpu.memory_space<vmem>>, %arg6: memref<1x32xf32, #tpu.memory_space<vmem>>, %arg7: memref<1xf32, #tpu.memory_space<smem>>, %arg8: memref<2x1xf32, #tpu.memory_space<vmem>>) attributes {dimension_semantics = [#tpu.dimension_semantics<parallel>], iteration_bounds = array<i64: 1>, scalar_prefetch = 0 : i64, scratch_operands = 0 : i64, tpu.core_type = #tpu.core_type<tc>, window_params = [{transform_indices = @transform_0, window_bounds = array<i64: 2, 32>}, {transform_indices = @transform_1, window_bounds = array<i64: 2, 32>}, {transform_indices = @transform_2, window_bounds = array<i64: 2, 32>}, {pipeline_mode = #tpu.pipeline_mode<synchronous>, transform_indices = @transform_3, window_bounds = array<i64: 1, 32>}, {pipeline_mode = #tpu.pipeline_mode<synchronous>, transform_indices = @transform_4, window_bounds = array<i64: 1, 32>}, {pipeline_mode = #tpu.pipeline_mode<synchronous>, transform_indices = @transform_5, window_bounds = array<i64: 1, 32>}, {transform_indices = @transform_6, window_bounds = array<i64: 1>}, {transform_indices = @transform_7, window_bounds = array<i64: 2, 1>}]} {
    %c0 = arith.constant 0 : index
    %c0_0 = arith.constant 0 : index
    %0 = vector.load %arg1[%c0, %c0_0] : memref<2x32xf32, #tpu.memory_space<vmem>>, vector<2x32xf32>
    %c0_1 = arith.constant 0 : index
    %c0_2 = arith.constant 0 : index
    %1 = vector.load %arg2[%c0_1, %c0_2] : memref<2x32xf32, #tpu.memory_space<vmem>>, vector<2x32xf32>
    %c0_3 = arith.constant 0 : index
    %c0_4 = arith.constant 0 : index
    %2 = vector.load %arg3[%c0_3, %c0_4] : memref<2x32xf32, #tpu.memory_space<vmem>>, vector<2x32xf32>
    %c0_5 = arith.constant 0 : index
    %c0_6 = arith.constant 0 : index
    %3 = vector.load %arg4[%c0_5, %c0_6] : memref<1x32xf32, #tpu.memory_space<vmem>>, vector<1x32xf32>
    %c0_7 = arith.constant 0 : index
    %c0_8 = arith.constant 0 : index
    %4 = vector.load %arg5[%c0_7, %c0_8] : memref<1x32xf32, #tpu.memory_space<vmem>>, vector<1x32xf32>
    %c0_9 = arith.constant 0 : index
    %c0_10 = arith.constant 0 : index
    %5 = vector.load %arg6[%c0_9, %c0_10] : memref<1x32xf32, #tpu.memory_space<vmem>>, vector<1x32xf32>
    %6 = vector.broadcast %3 : vector<1x32xf32> to vector<2x32xf32>
    %7 = arith.mulf %0, %6 : vector<2x32xf32>
    %cst = arith.constant dense<0.000000e+00> : vector<2xf32>
    %8 = vector.multi_reduction <add>, %7, %cst [1] : vector<2x32xf32> to vector<2xf32>
    %9 = vector.shape_cast %8 : vector<2xf32> to vector<2x1xf32>
    %10 = vector.broadcast %4 : vector<1x32xf32> to vector<2x32xf32>
    %11 = arith.mulf %1, %10 : vector<2x32xf32>
    %cst_11 = arith.constant dense<0.000000e+00> : vector<2xf32>
    %12 = vector.multi_reduction <add>, %11, %cst_11 [1] : vector<2x32xf32> to vector<2xf32>
    %13 = vector.shape_cast %12 : vector<2xf32> to vector<2x1xf32>
    %14 = arith.addf %9, %13 : vector<2x1xf32>
    %15 = vector.broadcast %5 : vector<1x32xf32> to vector<2x32xf32>
    %16 = arith.mulf %2, %15 : vector<2x32xf32>
    %cst_12 = arith.constant dense<0.000000e+00> : vector<2xf32>
    %17 = vector.multi_reduction <add>, %16, %cst_12 [1] : vector<2x32xf32> to vector<2xf32>
    %18 = vector.shape_cast %17 : vector<2xf32> to vector<2x1xf32>
    %19 = arith.addf %14, %18 : vector<2x1xf32>
    %c0_13 = arith.constant 0 : index
    %20 = memref.load %arg7[%c0_13] : memref<1xf32, #tpu.memory_space<smem>>
    %21 = vector.broadcast %20 : f32 to vector<2x1xf32>
    %22 = arith.addf %19, %21 : vector<2x1xf32>
    %23 = arith.negf %22 : vector<2x1xf32>
    %24 = math.exp %23 : vector<2x1xf32>
    %cst_14 = arith.constant 1.000000e+00 : f32
    %25 = vector.broadcast %cst_14 : f32 to vector<2x1xf32>
    %26 = arith.addf %25, %24 : vector<2x1xf32>
    %27 = arith.divf %25, %26 : vector<2x1xf32>
    %c0_15 = arith.constant 0 : index
    %c0_16 = arith.constant 0 : index
    %28 = vector.load %arg8[%c0_15, %c0_16] : memref<2x1xf32, #tpu.memory_space<vmem>>, vector<2x1xf32>
    tpu.vector_store %arg8[%c0_15, %c0_16], %27 {strides = array<i32>} : memref<2x1xf32, #tpu.memory_space<vmem>>, vector<2x1xf32>,
    return
  }
  func.func @transform_0(%arg0: i32) -> (i32, i32) {
    %c0_i32 = arith.constant 0 : i32
    %c0_i32_0 = arith.constant 0 : i32
    return %arg0, %c0_i32 : i32, i32
  }
  func.func @transform_1(%arg0: i32) -> (i32, i32) {
    %c0_i32 = arith.constant 0 : i32
    %c0_i32_0 = arith.constant 0 : i32
    return %arg0, %c0_i32 : i32, i32
  }
  func.func @transform_2(%arg0: i32) -> (i32, i32) {
    %c0_i32 = arith.constant 0 : i32
    %c0_i32_0 = arith.constant 0 : i32
    return %arg0, %c0_i32 : i32, i32
  }
  func.func @transform_3(%arg0: i32) -> (i32, i32) {
    %c0_i32 = arith.constant 0 : i32
    %c0_i32_0 = arith.constant 0 : i32
    %c0_i32_1 = arith.constant 0 : i32
    return %c0_i32, %c0_i32_0 : i32, i32
  }
  func.func @transform_4(%arg0: i32) -> (i32, i32) {
    %c0_i32 = arith.constant 0 : i32
    %c0_i32_0 = arith.constant 0 : i32
    %c0_i32_1 = arith.constant 0 : i32
    return %c0_i32, %c0_i32_0 : i32, i32
  }
  func.func @transform_5(%arg0: i32) -> (i32, i32) {
    %c0_i32 = arith.constant 0 : i32
    %c0_i32_0 = arith.constant 0 : i32
    %c0_i32_1 = arith.constant 0 : i32
    return %c0_i32, %c0_i32_0 : i32, i32
  }
  func.func @transform_6(%arg0: i32) -> i32 {
    %c0_i32 = arith.constant 0 : i32
    %c0_i32_0 = arith.constant 0 : i32
    return %c0_i32 : i32
  }
  func.func @transform_7(%arg0: i32) -> (i32, i32) {
    %c0_i32 = arith.constant 0 : i32
    %c0_i32_0 = arith.constant 0 : i32
    return %arg0, %c0_i32 : i32, i32
  }
}

</mosaic_0001>

<llo_original>
// kernel: tpu_custom_call.1
$region0: #{tpu_custom_call.1}
  #allocation0 [shape = 'u32[]', space=smem, size = 0x4, offset = 0x4, fixed_abs, tag = 'smem constant byte address 0x4 - core index']
  #allocation1 [shape = 'u32[144,128]{1,0:T(1,128)}', space=vmem, size = 0x12000, scoped, tag = 'internal scratch']
  #allocation2 [shape = 'f32[1]{0:T(128)S(6)}', space=smem, size = 0x200, scoped, tag = 'scoped memory for tpu_custom_call.1']
  %s0 = inlined_call_operand.vmem [shape: f32[2,32], index: 0, kind: input, shape index: {}]
  %s1 = inlined_call_operand.vmem [shape: f32[2,32], index: 1, kind: input, shape index: {}]
  %s2 = inlined_call_operand.vmem [shape: f32[2,32], index: 2, kind: input, shape index: {}]
  %s3 = inlined_call_operand.vmem [shape: f32[1,32], index: 3, kind: input, shape index: {}]
  %s4 = inlined_call_operand.vmem [shape: f32[1,32], index: 4, kind: input, shape index: {}]
  %s5 = inlined_call_operand.vmem [shape: f32[1,32], index: 5, kind: input, shape index: {}]
  %s6 = inlined_call_operand.<no memory space> [shape: f32[1], index: 6, kind: input, shape index: {}]
  %s7 = inlined_call_operand.vmem [shape: f32[2,1], index: 7, kind: output, shape index: {}]
  %s8 = sld [smem:[#allocation0]]
  $region38: #{tpu_custom_call.1} parent=0
    _
  %s10 = ssub.s32 1, %s8
  %s11 = scalar_select 0, %s10, %s8
  %12 = sst [smem:[#allocation2]] %s6
  // Predicated region
  $region2: #{tpu_custom_call.1} parent=0 // pred_check
    _
  $region3: #{tpu_custom_call.1} parent=0 // pred_check_branch
    %14 = sbr.rel (0) target = $region5
  $region4: #{tpu_custom_call.1} parent=0 // pred_region
    _
  $region5: #{tpu_custom_call.1} parent=0 // pred_fallthru
    _
  // Predicated region
  $region6: #{tpu_custom_call.1} parent=0 // pred_check
    _
  $region7: #{tpu_custom_call.1} parent=0 // pred_check_branch
    %16 = sbr.rel (0) target = $region9
  $region8: #{tpu_custom_call.1} parent=0 // pred_region
    _
  $region9: #{tpu_custom_call.1} parent=0 // pred_fallthru
    _
  // Predicated region
  $region10: #{tpu_custom_call.1} parent=0 // pred_check
    _
  $region11: #{tpu_custom_call.1} parent=0 // pred_check_branch
    %18 = sbr.rel (0) target = $region13
  $region12: #{tpu_custom_call.1} parent=0 // pred_region
    _
  $region13: #{tpu_custom_call.1} parent=0 // pred_fallthru
    _
  // Predicated region
  $region14: #{tpu_custom_call.1} parent=0 // pred_check
    _
  $region15: #{tpu_custom_call.1} parent=0 // pred_check_branch
    %20 = sbr.rel (0) target = $region17
  $region16: #{tpu_custom_call.1} parent=0 // pred_region
    _
  $region17: #{tpu_custom_call.1} parent=0 // pred_fallthru
    _
  // Predicated region
  $region18: #{tpu_custom_call.1} parent=0 // pred_check
    _
  $region19: #{tpu_custom_call.1} parent=0 // pred_check_branch
    %22 = sbr.rel (0) target = $region21
  $region20: #{tpu_custom_call.1} parent=0 // pred_region
    _
  $region21: #{tpu_custom_call.1} parent=0 // pred_fallthru
    _
  // Predicated region
  $region22: #{tpu_custom_call.1} parent=0 // pred_check
    _
  $region23: #{tpu_custom_call.1} parent=0 // pred_check_branch
    %24 = sbr.rel (0) target = $region25
  $region24: #{tpu_custom_call.1} parent=0 // pred_region
    _
  $region25: #{tpu_custom_call.1} parent=0 // pred_fallthru
    _
  // Predicated region
  $region26: #{tpu_custom_call.1} parent=0 // pred_check
    _
  $region27: #{tpu_custom_call.1} parent=0 // pred_check_branch
    %26 = sbr.rel (0) target = $region29
  $region28: #{tpu_custom_call.1} parent=0 // pred_region
    _
  $region29: #{tpu_custom_call.1} parent=0 // pred_fallthru
    _
  %v27 = vld [vmem:[%s0] sm:$0x3]
  %v28 = vld [vmem:[%s1] sm:$0x3]
  %v29 = vld [vmem:[%s2] sm:$0x3]
  %v30 = vld [vmem:[%s3] sm:$0x1]
  %v31 = vld [vmem:[%s4] sm:$0x1]
  %v32 = vld [vmem:[%s5] sm:$0x1]
  %v34 = vlaneseq
  %v35 = vshrl.u32 %v34, 7
  %v36 = vsub.s32 0, %v35
  %v37 = vrot.slane %v30, %v36
  %v39 = vmul.f32 %v27, %v37
  %vm40 = vcmask 254976
  %v41 = vsel %vm40, %v39, 0.0
  %42 = vadd.xlane.f32.xlu0 %v41
  %v43 = vpop.xlane.xlu0 %42
  %v45 = vlaneseq
  %v46 = vshrl.u32 %v45, 7
  %v47 = vsub.s32 0, %v46
  %v48 = vrot.slane %v31, %v47
  %v50 = vmul.f32 %v28, %v48
  %v51 = vsel %vm40, %v50, 0.0
  %52 = vadd.xlane.f32.xlu0 %v51
  %v53 = vpop.xlane.xlu0 %52
  %v54 = vadd.f32 %v43, %v53
  %v56 = vlaneseq
  %v57 = vshrl.u32 %v56, 7
  %v58 = vsub.s32 0, %v57
  %v59 = vrot.slane %v32, %v58
  %v61 = vmul.f32 %v29, %v59
  %v62 = vsel %vm40, %v61, 0.0
  %63 = vadd.xlane.f32.xlu0 %v62
  %v64 = vpop.xlane.xlu0 %63
  %v65 = vadd.f32 %v54, %v64
  %s66 = sld [smem:[#allocation2]]
  %v67 = vstv %s66
  %v68 = vadd.f32 %v65, %v67
  %v69 = vxor.u32 %v68, 2147483648
  %v70 = vmul.f32 %v69, 1.442695
  %v71 = vpow.pop %v70
  %v72 = vadd.f32 %v71, 1.0
  %v73 = vrcp.pop %v72
  %v74 = vmul.f32 1.0, %v73
  %vm75 = vcmask 1024
  %76 = vst.msk [vmem:[%s7] sm:$0x3] %vm75, %v74
  // Predicated region
  $region30: #{tpu_custom_call.1} parent=0 // pred_check
    _
  $region31: #{tpu_custom_call.1} parent=0 // pred_check_branch
    %78 = sbr.rel (0) target = $region33
  $region32: #{tpu_custom_call.1} parent=0 // pred_region
    _
  $region33: #{tpu_custom_call.1} parent=0 // pred_fallthru
    _
  // Predicated region
  $region34: #{tpu_custom_call.1} parent=0 // pred_check
    _
  $region35: #{tpu_custom_call.1} parent=0 // pred_check_branch
    %80 = sbr.rel (0) target = $region37
  $region36: #{tpu_custom_call.1} parent=0 // pred_region
    _
  $region37: #{tpu_custom_call.1} parent=0 // pred_fallthru
    _

</llo_original>
